<compile_context>
chip_gen: v5e
topology: v5e:2x2
jax: 0.10.0
libtpu: 0.0.40
codegen_flags: <defaults>
</compile_context>

<pallas_src>
import functools
import math

import jax
import jax.numpy as jnp
from jax import lax
from jax.experimental import pallas as pl
from jax.experimental.pallas import tpu as pltpu


SCAN_CHUNK = 128  # time-chunk for the in-kernel scan (power of two, multiple of 8)


def qgru_block_kernel(x_ref, h0_ref, g1_ref, g2_ref, wg_ref, bg_ref, wo_ref, bo_ref,
                      wff_ref, bff_ref, wfo_ref, bfo_ref, lin_ref,
                      y_ref, hN_ref, *, scan_chunk):
    eps = 1e-6
    BB, L, D = x_ref.shape
    H = hN_ref.shape[-1]
    W = BB * H

    def bmm(a_f32, w_ref, b_ref):
        # bf16 MXU inputs, f32 accumulation, f32 bias add.
        return jnp.dot(a_f32.astype(jnp.bfloat16), w_ref[...],
                       preferred_element_type=jnp.float32) + b_ref[...]

    # ---- x as (BB*L, D) token rows (sublane stack of contiguous (L, D) slabs) ----
    if BB > 1:
        x = jnp.concatenate([x_ref[bi, :, :] for bi in range(BB)], axis=0)
    else:
        x = x_ref[0, :, :]

    # ---- RMSNorm (qgru branch) ----
    xn = x * lax.rsqrt(jnp.mean(x * x, axis=-1, keepdims=True) + eps) * g1_ref[...]

    # ---- fused QGRU gate projection: [fc_forget | fc_input], N = 2H ----
    gates = bmm(xn, wg_ref, bg_ref)                        # (BB*L, 2H)
    remember = jax.nn.sigmoid(gates[:, :H]) * lin_ref[...]  # (BB*L, H)
    forget = 1.0 - remember
    ir = jnp.tanh(gates[:, H:]) * remember                 # input * remember

    # ---- relayout H-wide gate slabs to the lane-dense time-major scan layout ----
    # row l = [gate(b=0, l, :) | gate(b=1, l, :) | ...]   (O(BB) contiguous-slice concat)
    def to_time_major(z):                                  # (BB*L, H) -> (L, BB*H)
        if BB == 1:
            return z
        return jnp.concatenate([z[bi * L:(bi + 1) * L, :] for bi in range(BB)], axis=1)

    A = to_time_major(forget)                              # (L, W)
    Bc = to_time_major(ir)                                 # (L, W)
    h0_row = jnp.concatenate([h0_ref[bi, :, :] for bi in range(BB)], axis=1)   # (1, W)

    # ---- time-chunked Hillis-Steele scan of h_t = f_t * h_{t-1} + ir_t ----
    # Affine composition (a2,b2) o (a1,b1) = (a2*a1, a2*b1 + b2).  The shift-by-d uses
    # pltpu.roll (XLU slot) + one row-iota mask select instead of ones/zeros concats.
    h_carry = h0_row
    h_chunks = []
    for c0 in range(0, L, scan_chunk):
        n = min(scan_chunk, L - c0)
        a_c = A[c0:c0 + n, :]
        b_c = Bc[c0:c0 + n, :]
        if n > 1:
            row = lax.broadcasted_iota(jnp.int32, (n, W), 0)
            d = 1
            while d < n:                                   # ceil(log2(n)) steps
                a_prev = jnp.where(row < d, 1.0, pltpu.roll(a_c, shift=d, axis=0))
                b_prev = jnp.where(row < d, 0.0, pltpu.roll(b_c, shift=d, axis=0))
                b_c = a_c * b_prev + b_c
                a_c = a_c * a_prev
                d *= 2
        h_rows = a_c * h_carry + b_c                       # (n, W) hidden states of this chunk
        h_chunks.append(h_rows)
        h_carry = h_rows[n - 1:n, :]                       # carry into the next chunk
    h_t = h_chunks[0] if len(h_chunks) == 1 else jnp.concatenate(h_chunks, axis=0)

    # ---- final hidden state (tiny per-batch stores) ----
    for bi in range(BB):
        hN_ref[bi, :, :] = h_carry[:, bi * H:(bi + 1) * H]

    # ---- back to batch-major (BB*L, H) token rows for the output projection ----
    if BB == 1:
        h_bm = h_t
    else:
        h_bm = jnp.concatenate([h_t[:, bi * H:(bi + 1) * H] for bi in range(BB)], axis=0)

    # ---- qgru output projection + residual (dropout == identity, eval mode) ----
    x1 = bmm(h_bm, wo_ref, bo_ref) + x                     # (BB*L, D)

    # ---- RMSNorm (ffn branch) + fused SwiGLU FFN + residual ----
    xn2 = x1 * lax.rsqrt(jnp.mean(x1 * x1, axis=-1, keepdims=True) + eps) * g2_ref[...]
    ff = bmm(xn2, wff_ref, bff_ref)                        # (BB*L, 2H) = [fc | fc_act]
    gate = ff[:, H:]
    hidden_ff = ff[:, :H] * (gate * jax.nn.sigmoid(gate))  # fc(x) * SiLU(fc_act(x))
    y2 = bmm(hidden_ff, wfo_ref, bfo_ref) + x1             # (BB*L, D)

    for bi in range(BB):
        y_ref[bi, :, :] = y2[bi * L:(bi + 1) * L, :]


def pack_params(p):
    """Fuse paired projections and pre-cast MXU weights to bf16."""
    bf16 = jnp.bfloat16
    return dict(
        g1=p["g1"], g2=p["g2"], lin=p["lin"],
        wg=jnp.concatenate([p["wf"], p["wi"]], axis=1).astype(bf16),   # (D, 2H)
        bg=jnp.concatenate([p["bf"], p["bi"]], axis=1),                # (1, 2H)
        wo=p["wo"].astype(bf16), bo=p["bo"],
        wff=jnp.concatenate([p["wfc"], p["wfa"]], axis=1).astype(bf16),
        bff=jnp.concatenate([p["bfc"], p["bfa"]], axis=1),
        wfo=p["wfo"].astype(bf16), bfo=p["bfo"],
    )


def _vmem_capacity_bytes():
    try:
        info = pltpu.get_tpu_info()
        for attr in ("vmem_capacity_bytes", "vmem_bytes", "vmem_size_bytes"):
            v = getattr(info, attr, None)
            if v:
                return int(v)
    except Exception:
        pass
    return 64 * 1024 * 1024          # conservative default (v7x per-TC VMEM)


def _est_vmem_bytes(bb, L, D, H, scan_chunk):
    rows = bb * L
    f32 = 4
    io = 2 * 2 * rows * D * f32 + 2 * 2 * bb * H * f32            # double-buffered in/out blocks
    acts = rows * f32 * (4 * D + 2 * (2 * H) + 4 * H)             # xn/x1/y + gate/ff + h slabs
    scan = 4 * min(L, scan_chunk) * bb * H * f32                  # live scan temporaries
    wts = 2 * (2 * D * 2 * H + 2 * H * D) + f32 * (2 * 2 * H + 2 * D + H)
    return io + acts + scan + wts + (2 << 20)                     # + headroom


def _choose_bb(B, L, D, H, tile_budget, scan_chunk):
    lane_q = 128 // math.gcd(H, 128)          # BB multiple of this keeps BB*H % 128 == 0
    bb = lane_q * max(1, -(-512 // (L * lane_q)))       # target BB*L >= 512 MXU rows
    bb = min(bb, lane_q * (-(-B // lane_q)))            # never tile far past the batch
    if B >= 2 * lane_q:                                  # >= 2 programs (v7x megacore)
        bb = min(bb, lane_q * max(1, (B // 2) // lane_q))
    while bb > lane_q and _est_vmem_bytes(bb, L, D, H, scan_chunk) > tile_budget:
        bb -= lane_q                                     # cap by per-program VMEM estimate
    return max(1, bb)


def qgru_block(x, hidden, p, *, scan_chunk=SCAN_CHUNK):
    """x: (B, L, D), hidden: (B, H) -> (y (B, L, D), hidden_out (B, H))."""
    B, L, D = x.shape
    H = hidden.shape[-1]

    vmem_cap = _vmem_capacity_bytes()
    BB = _choose_bb(B, L, D, H, vmem_cap // 3, scan_chunk)
    Bp = -(-B // BB) * BB                                # pad batch instead of BB=1 fallback
    grid = (Bp // BB,)

    x3 = x.astype(jnp.float32)
    h3 = hidden.astype(jnp.float32)[:, None, :]          # (B, 1, H)
    if Bp != B:
        x3 = jnp.pad(x3, ((0, Bp - B), (0, 0), (0, 0)))
        h3 = jnp.pad(h3, ((0, Bp - B), (0, 0), (0, 0)))

    kp = pack_params(p)
    weights = (kp["g1"], kp["g2"], kp["wg"], kp["bg"], kp["wo"], kp["bo"],
               kp["wff"], kp["bff"], kp["wfo"], kp["bfo"], kp["lin"])

    def full_spec(arr):                                  # all weights/biases are 2-D
        return pl.BlockSpec(arr.shape, lambda b: (0, 0))

    kernel = functools.partial(qgru_block_kernel, scan_chunk=scan_chunk)

    y3, hN3 = pl.pallas_call(
        kernel,
        out_shape=(
            jax.ShapeDtypeStruct((Bp, L, D), jnp.float32),
            jax.ShapeDtypeStruct((Bp, 1, H), jnp.float32),
        ),
        grid=grid,
        # 3-D blocks whose trailing two dims equal the full array dims -> legal for any BB.
        in_specs=[pl.BlockSpec((BB, L, D), lambda b: (b, 0, 0)),
                  pl.BlockSpec((BB, 1, H), lambda b: (b, 0, 0))]
                 + [full_spec(w) for w in weights],
        out_specs=(pl.BlockSpec((BB, L, D), lambda b: (b, 0, 0)),
                   pl.BlockSpec((BB, 1, H), lambda b: (b, 0, 0))),
        compiler_params=pltpu.CompilerParams(
            dimension_semantics=("parallel",),
            vmem_limit_bytes=min(int(vmem_cap * 0.8), 112 * 1024 * 1024)),
    )(x3, h3, *weights)

    return y3[:B], hN3[:B, 0, :]


def init_params(key, D, H):
    """Deterministic synthetic parameters mimicking nn.Linear init (uniform +-1/sqrt(fan_in)).
    Weights stored pre-transposed as (in, out)."""
    ks = jax.random.split(key, 6)

    def lin(k, fan_in, fan_out):
        kw, kb = jax.random.split(k)
        bound = 1.0 / (fan_in ** 0.5)
        W = jax.random.uniform(kw, (fan_in, fan_out), jnp.float32, -bound, bound)
        b = jax.random.uniform(kb, (1, fan_out), jnp.float32, -bound, bound)
        return W, b

    wf, bf = lin(ks[0], D, H)
    wi, bi = lin(ks[1], D, H)
    wo, bo = lin(ks[2], H, D)
    wfc, bfc = lin(ks[3], D, H)
    wfa, bfa = lin(ks[4], D, H)
    wfo, bfo = lin(ks[5], H, D)
    return dict(
        g1=jnp.ones((1, D), jnp.float32), g2=jnp.ones((1, D), jnp.float32),
        wf=wf, bf=bf, wi=wi, bi=bi, wo=wo, bo=bo,
        wfc=wfc, bfc=bfc, wfa=wfa, bfa=bfa, wfo=wfo, bfo=bfo,
        lin=jnp.linspace(0.0, 1.0, H, dtype=jnp.float32)[None, :],
    )


def reference(x, hidden, p, mxu_dtype=jnp.float32):
    """Pure-JAX reference matching the PyTorch module (eval mode).
    mxu_dtype=bf16 mirrors the kernel's matmul-input precision (f32 accumulation)."""
    eps = 1e-6

    def mm(a, w, b):
        return jnp.dot(a.astype(mxu_dtype), w.astype(mxu_dtype),
                       preferred_element_type=jnp.float32) + b

    rms = lambda v, g: v * lax.rsqrt(jnp.mean(v * v, -1, keepdims=True) + eps) * g[0]

    xn = rms(x, p["g1"])
    remember = jax.nn.sigmoid(mm(xn, p["wf"], p["bf"])) * p["lin"][0]
    forget = 1.0 - remember
    inp = jnp.tanh(mm(xn, p["wi"], p["bi"]))

    def step(h, fi):
        f, ir = fi
        h = f * h + ir
        return h, h

    h_last, h_all = lax.scan(
        step, hidden,
        (jnp.transpose(forget, (1, 0, 2)), jnp.transpose(inp * remember, (1, 0, 2))))
    h_all = jnp.transpose(h_all, (1, 0, 2))
    x1 = mm(h_all, p["wo"], p["bo"]) + x
    xn2 = rms(x1, p["g2"])
    a = mm(xn2, p["wfc"], p["bfc"])
    g = mm(xn2, p["wfa"], p["bfa"])
    o = mm(a * (g * jax.nn.sigmoid(g)), p["wfo"], p["bfo"])
    return o + x1, h_last


def _check(name, x, hidden, params):
    y, h_out = qgru_block(x, hidden, params)
    jax.block_until_ready((y, h_out))

    # 1) precision-matched reference (bf16 MXU inputs, f32 accumulation): tight check
    y_m, h_m = reference(x, hidden, params, mxu_dtype=jnp.bfloat16)
    assert jnp.allclose(y, y_m, atol=2e-2, rtol=2e-2), f"{name}: output mismatch (bf16 ref)"
    assert jnp.allclose(h_out, h_m, atol=2e-2, rtol=2e-2), f"{name}: hidden mismatch (bf16 ref)"

    # 2) full-f32 reference (PyTorch eval-mode semantics); looser tolerance reflects the
    #    intentional bf16-matmul-input precision trade (accumulation stays f32).
    y_r, h_r = reference(x, hidden, params)
    assert jnp.allclose(y, y_r, atol=8e-2, rtol=8e-2), f"{name}: output mismatch (f32 ref)"
    assert jnp.allclose(h_out, h_r, atol=8e-2, rtol=8e-2), f"{name}: hidden mismatch (f32 ref)"


if __name__ == "__main__":
    B, L, D, H = 2, 8, 32, 64   # batch, seq, dim, dim_hidden
    key = jax.random.PRNGKey(0)
    k_x, k_h, k_p, k_x2, k_h2 = jax.random.split(key, 5)

    # primary small config from the module spec
    x = jax.random.normal(k_x, (B, L, D), jnp.float32)
    hidden = jax.random.normal(k_h, (B, H), jnp.float32)
    params = init_params(k_p, D, H)
    _check("small", x, hidden, params)

    # second config: odd batch (exercises zero-padding) + multi-program "parallel" grid
    B2, L2 = 5, 16
    x2 = jax.random.normal(k_x2, (B2, L2, D), jnp.float32)
    hidden2 = jax.random.normal(k_h2, (B2, H), jnp.float32)
    _check("padded", x2, hidden2, params)

    print("KERNEL_OK")
</pallas_src>

<mosaic_0001>
module attributes {stable_mosaic.version = 11 : i64} {
  func.func @qgru_block_kernel(%arg0: i32, %arg1: memref<2x8x32xf32, #tpu.memory_space<vmem>>, %arg2: memref<2x1x64xf32, #tpu.memory_space<vmem>>, %arg3: memref<1x32xf32, #tpu.memory_space<vmem>>, %arg4: memref<1x32xf32, #tpu.memory_space<vmem>>, %arg5: memref<32x128xbf16, #tpu.memory_space<vmem>>, %arg6: memref<1x128xf32, #tpu.memory_space<vmem>>, %arg7: memref<64x32xbf16, #tpu.memory_space<vmem>>, %arg8: memref<1x32xf32, #tpu.memory_space<vmem>>, %arg9: memref<32x128xbf16, #tpu.memory_space<vmem>>, %arg10: memref<1x128xf32, #tpu.memory_space<vmem>>, %arg11: memref<64x32xbf16, #tpu.memory_space<vmem>>, %arg12: memref<1x32xf32, #tpu.memory_space<vmem>>, %arg13: memref<1x64xf32, #tpu.memory_space<vmem>>, %arg14: memref<2x8x32xf32, #tpu.memory_space<vmem>>, %arg15: memref<2x1x64xf32, #tpu.memory_space<vmem>>) attributes {dimension_semantics = [#tpu.dimension_semantics<parallel>], iteration_bounds = array<i64: 1>, scalar_prefetch = 0 : i64, scratch_operands = 0 : i64, tpu.core_type = #tpu.core_type<tc>, window_params = [{transform_indices = @transform_0, window_bounds = array<i64: 2, 8, 32>}, {transform_indices = @transform_1, window_bounds = array<i64: 2, 1, 64>}, {pipeline_mode = #tpu.pipeline_mode<synchronous>, transform_indices = @transform_2, window_bounds = array<i64: 1, 32>}, {pipeline_mode = #tpu.pipeline_mode<synchronous>, transform_indices = @transform_3, window_bounds = array<i64: 1, 32>}, {pipeline_mode = #tpu.pipeline_mode<synchronous>, transform_indices = @transform_4, window_bounds = array<i64: 32, 128>}, {pipeline_mode = #tpu.pipeline_mode<synchronous>, transform_indices = @transform_5, window_bounds = array<i64: 1, 128>}, {pipeline_mode = #tpu.pipeline_mode<synchronous>, transform_indices = @transform_6, window_bounds = array<i64: 64, 32>}, {pipeline_mode = #tpu.pipeline_mode<synchronous>, transform_indices = @transform_7, window_bounds = array<i64: 1, 32>}, {pipeline_mode = #tpu.pipeline_mode<synchronous>, transform_indices = @transform_8, window_bounds = array<i64: 32, 128>}, {pipeline_mode = #tpu.pipeline_mode<synchronous>, transform_indices = @transform_9, window_bounds = array<i64: 1, 128>}, {pipeline_mode = #tpu.pipeline_mode<synchronous>, transform_indices = @transform_10, window_bounds = array<i64: 64, 32>}, {pipeline_mode = #tpu.pipeline_mode<synchronous>, transform_indices = @transform_11, window_bounds = array<i64: 1, 32>}, {pipeline_mode = #tpu.pipeline_mode<synchronous>, transform_indices = @transform_12, window_bounds = array<i64: 1, 64>}, {transform_indices = @transform_13, window_bounds = array<i64: 2, 8, 32>}, {transform_indices = @transform_14, window_bounds = array<i64: 2, 1, 64>}]} {
    %c0 = arith.constant 0 : index
    %c0_0 = arith.constant 0 : index
    %c0_1 = arith.constant 0 : index
    %0 = vector.load %arg1[%c0, %c0_0, %c0_1] : memref<2x8x32xf32, #tpu.memory_space<vmem>>, vector<1x8x32xf32>
    %1 = vector.shape_cast %0 : vector<1x8x32xf32> to vector<8x32xf32>
    %c1 = arith.constant 1 : index
    %c0_2 = arith.constant 0 : index
    %c0_3 = arith.constant 0 : index
    %2 = vector.load %arg1[%c1, %c0_2, %c0_3] : memref<2x8x32xf32, #tpu.memory_space<vmem>>, vector<1x8x32xf32>
    %3 = vector.shape_cast %2 : vector<1x8x32xf32> to vector<8x32xf32>
    %4 = tpu.concatenate %1, %3 in 0 : vector<8x32xf32>, vector<8x32xf32> -> vector<16x32xf32>
    %5 = arith.mulf %4, %4 : vector<16x32xf32>
    %cst = arith.constant dense<0.000000e+00> : vector<16xf32>
    %6 = vector.multi_reduction <add>, %5, %cst [1] : vector<16x32xf32> to vector<16xf32>
    %7 = vector.shape_cast %6 : vector<16xf32> to vector<16x1xf32>
    %cst_4 = arith.constant 3.200000e+01 : f32
    %8 = vector.broadcast %cst_4 : f32 to vector<16x1xf32>
    %9 = arith.divf %7, %8 : vector<16x1xf32>
    %cst_5 = arith.constant 9.99999997E-7 : f32
    %10 = vector.broadcast %cst_5 : f32 to vector<16x1xf32>
    %11 = arith.addf %9, %10 : vector<16x1xf32>
    %12 = math.rsqrt %11 : vector<16x1xf32>
    %13 = vector.broadcast %12 : vector<16x1xf32> to vector<16x32xf32>
    %14 = arith.mulf %4, %13 : vector<16x32xf32>
    %c0_6 = arith.constant 0 : index
    %c0_7 = arith.constant 0 : index
    %15 = vector.load %arg3[%c0_6, %c0_7] : memref<1x32xf32, #tpu.memory_space<vmem>>, vector<1x32xf32>
    %16 = vector.broadcast %15 : vector<1x32xf32> to vector<16x32xf32>
    %17 = arith.mulf %14, %16 : vector<16x32xf32>
    %18 = arith.truncf %17 : vector<16x32xf32> to vector<16x32xbf16>
    %c0_8 = arith.constant 0 : index
    %c0_9 = arith.constant 0 : index
    %19 = vector.load %arg5[%c0_8, %c0_9] : memref<32x128xbf16, #tpu.memory_space<vmem>>, vector<32x128xbf16>
    %cst_10 = arith.constant dense<0.000000e+00> : vector<16x128xf32>
    %20 = tpu.matmul %18, %19, %cst_10 {dimension_numbers = #tpu.dot_dimension_numbers<[1], [0], [0], [1], [0, 0, 1, 1], [], []>} : vector<16x32xbf16>, vector<32x128xbf16>, vector<16x128xf32> -> vector<16x128xf32>
    %c0_11 = arith.constant 0 : index
    %c0_12 = arith.constant 0 : index
    %21 = vector.load %arg6[%c0_11, %c0_12] : memref<1x128xf32, #tpu.memory_space<vmem>>, vector<1x128xf32>
    %22 = vector.broadcast %21 : vector<1x128xf32> to vector<16x128xf32>
    %23 = arith.addf %20, %22 : vector<16x128xf32>
    %24 = vector.extract_strided_slice %23 {offsets = [0, 0], sizes = [16, 64], strides = [1, 1]} : vector<16x128xf32> to vector<16x64xf32>
    %25 = arith.negf %24 : vector<16x64xf32>
    %26 = math.exp %25 : vector<16x64xf32>
    %cst_13 = arith.constant 1.000000e+00 : f32
    %27 = vector.broadcast %cst_13 : f32 to vector<16x64xf32>
    %28 = arith.addf %27, %26 : vector<16x64xf32>
    %29 = arith.divf %27, %28 : vector<16x64xf32>
    %c0_14 = arith.constant 0 : index
    %c0_15 = arith.constant 0 : index
    %30 = vector.load %arg13[%c0_14, %c0_15] : memref<1x64xf32, #tpu.memory_space<vmem>>, vector<1x64xf32>
    %31 = vector.broadcast %30 : vector<1x64xf32> to vector<16x64xf32>
    %32 = arith.mulf %29, %31 : vector<16x64xf32>
    %cst_16 = arith.constant 1.000000e+00 : f32
    %33 = vector.broadcast %cst_16 : f32 to vector<16x64xf32>
    %34 = arith.subf %33, %32 : vector<16x64xf32>
    %35 = vector.extract_strided_slice %23 {offsets = [0, 64], sizes = [16, 64], strides = [1, 1]} : vector<16x128xf32> to vector<16x64xf32>
    %36 = math.tanh %35 : vector<16x64xf32>
    %37 = arith.mulf %36, %32 : vector<16x64xf32>
    %38 = vector.extract_strided_slice %34 {offsets = [0, 0], sizes = [8, 64], strides = [1, 1]} : vector<16x64xf32> to vector<8x64xf32>
    %39 = vector.extract_strided_slice %34 {offsets = [8, 0], sizes = [8, 64], strides = [1, 1]} : vector<16x64xf32> to vector<8x64xf32>
    %40 = tpu.concatenate %38, %39 in 1 : vector<8x64xf32>, vector<8x64xf32> -> vector<8x128xf32>
    %41 = vector.extract_strided_slice %37 {offsets = [0, 0], sizes = [8, 64], strides = [1, 1]} : vector<16x64xf32> to vector<8x64xf32>
    %42 = vector.extract_strided_slice %37 {offsets = [8, 0], sizes = [8, 64], strides = [1, 1]} : vector<16x64xf32> to vector<8x64xf32>
    %43 = tpu.concatenate %41, %42 in 1 : vector<8x64xf32>, vector<8x64xf32> -> vector<8x128xf32>
    %c0_17 = arith.constant 0 : index
    %c0_18 = arith.constant 0 : index
    %c0_19 = arith.constant 0 : index
    %44 = vector.load %arg2[%c0_17, %c0_18, %c0_19] : memref<2x1x64xf32, #tpu.memory_space<vmem>>, vector<1x1x64xf32>
    %45 = vector.shape_cast %44 : vector<1x1x64xf32> to vector<1x64xf32>
    %c1_20 = arith.constant 1 : index
    %c0_21 = arith.constant 0 : index
    %c0_22 = arith.constant 0 : index
    %46 = vector.load %arg2[%c1_20, %c0_21, %c0_22] : memref<2x1x64xf32, #tpu.memory_space<vmem>>, vector<1x1x64xf32>
    %47 = vector.shape_cast %46 : vector<1x1x64xf32> to vector<1x64xf32>
    %48 = tpu.concatenate %45, %47 in 1 : vector<1x64xf32>, vector<1x64xf32> -> vector<1x128xf32>
    %49 = tpu.iota {dimensions = array<i32: 0>} : vector<8x128xi32>
    %c1_i32 = arith.constant 1 : i32
    %50 = vector.broadcast %c1_i32 : i32 to vector<8x128xi32>
    %51 = arith.cmpi slt, %49, %50 : vector<8x128xi32>
    %c1_i32_23 = arith.constant 1 : i32
    %52 = tpu.dynamic_rotate %40 by %c1_i32_23 dim 0 : vector<8x128xf32>, i32 -> vector<8x128xf32>
    %cst_24 = arith.constant 1.000000e+00 : f32
    %53 = vector.broadcast %cst_24 : f32 to vector<8x128xf32>
    %54 = arith.select %51, %53, %52 : vector<8x128xi1>, vector<8x128xf32>
    %c1_i32_25 = arith.constant 1 : i32
    %55 = vector.broadcast %c1_i32_25 : i32 to vector<8x128xi32>
    %56 = arith.cmpi slt, %49, %55 : vector<8x128xi32>
    %c1_i32_26 = arith.constant 1 : i32
    %57 = tpu.dynamic_rotate %43 by %c1_i32_26 dim 0 : vector<8x128xf32>, i32 -> vector<8x128xf32>
    %cst_27 = arith.constant 0.000000e+00 : f32
    %58 = vector.broadcast %cst_27 : f32 to vector<8x128xf32>
    %59 = arith.select %56, %58, %57 : vector<8x128xi1>, vector<8x128xf32>
    %60 = arith.mulf %40, %59 : vector<8x128xf32>
    %61 = arith.addf %60, %43 : vector<8x128xf32>
    %62 = arith.mulf %40, %54 : vector<8x128xf32>
    %c2_i32 = arith.constant 2 : i32
    %63 = vector.broadcast %c2_i32 : i32 to vector<8x128xi32>
    %64 = arith.cmpi slt, %49, %63 : vector<8x128xi32>
    %c2_i32_28 = arith.constant 2 : i32
    %65 = tpu.dynamic_rotate %62 by %c2_i32_28 dim 0 : vector<8x128xf32>, i32 -> vector<8x128xf32>
    %cst_29 = arith.constant 1.000000e+00 : f32
    %66 = vector.broadcast %cst_29 : f32 to vector<8x128xf32>
    %67 = arith.select %64, %66, %65 : vector<8x128xi1>, vector<8x128xf32>
    %c2_i32_30 = arith.constant 2 : i32
    %68 = vector.broadcast %c2_i32_30 : i32 to vector<8x128xi32>
    %69 = arith.cmpi slt, %49, %68 : vector<8x128xi32>
    %c2_i32_31 = arith.constant 2 : i32
    %70 = tpu.dynamic_rotate %61 by %c2_i32_31 dim 0 : vector<8x128xf32>, i32 -> vector<8x128xf32>
    %cst_32 = arith.constant 0.000000e+00 : f32
    %71 = vector.broadcast %cst_32 : f32 to vector<8x128xf32>
    %72 = arith.select %69, %71, %70 : vector<8x128xi1>, vector<8x128xf32>
    %73 = arith.mulf %62, %72 : vector<8x128xf32>
    %74 = arith.addf %73, %61 : vector<8x128xf32>
    %75 = arith.mulf %62, %67 : vector<8x128xf32>
    %c4_i32 = arith.constant 4 : i32
    %76 = vector.broadcast %c4_i32 : i32 to vector<8x128xi32>
    %77 = arith.cmpi slt, %49, %76 : vector<8x128xi32>
    %c4_i32_33 = arith.constant 4 : i32
    %78 = tpu.dynamic_rotate %75 by %c4_i32_33 dim 0 : vector<8x128xf32>, i32 -> vector<8x128xf32>
    %cst_34 = arith.constant 1.000000e+00 : f32
    %79 = vector.broadcast %cst_34 : f32 to vector<8x128xf32>
    %80 = arith.select %77, %79, %78 : vector<8x128xi1>, vector<8x128xf32>
    %c4_i32_35 = arith.constant 4 : i32
    %81 = vector.broadcast %c4_i32_35 : i32 to vector<8x128xi32>
    %82 = arith.cmpi slt, %49, %81 : vector<8x128xi32>
    %c4_i32_36 = arith.constant 4 : i32
    %83 = tpu.dynamic_rotate %74 by %c4_i32_36 dim 0 : vector<8x128xf32>, i32 -> vector<8x128xf32>
    %cst_37 = arith.constant 0.000000e+00 : f32
    %84 = vector.broadcast %cst_37 : f32 to vector<8x128xf32>
    %85 = arith.select %82, %84, %83 : vector<8x128xi1>, vector<8x128xf32>
    %86 = arith.mulf %75, %85 : vector<8x128xf32>
    %87 = arith.addf %86, %74 : vector<8x128xf32>
    %88 = arith.mulf %75, %80 : vector<8x128xf32>
    %89 = vector.broadcast %48 : vector<1x128xf32> to vector<8x128xf32>
    %90 = arith.mulf %88, %89 : vector<8x128xf32>
    %91 = arith.addf %90, %87 : vector<8x128xf32>
    %92 = vector.extract_strided_slice %91 {offsets = [7, 0], sizes = [1, 128], strides = [1, 1]} : vector<8x128xf32> to vector<1x128xf32>
    %93 = vector.extract_strided_slice %92 {offsets = [0, 0], sizes = [1, 64], strides = [1, 1]} : vector<1x128xf32> to vector<1x64xf32>
    %c0_38 = arith.constant 0 : index
    %c0_39 = arith.constant 0 : index
    %c0_40 = arith.constant 0 : index
    %94 = vector.load %arg15[%c0_38, %c0_39, %c0_40] : memref<2x1x64xf32, #tpu.memory_space<vmem>>, vector<1x1x64xf32>
    %95 = vector.shape_cast %94 : vector<1x1x64xf32> to vector<1x64xf32>
    %96 = vector.shape_cast %93 : vector<1x64xf32> to vector<1x1x64xf32>
    tpu.vector_store %arg15[%c0_38, %c0_39, %c0_40], %96 {strides = array<i32>} : memref<2x1x64xf32, #tpu.memory_space<vmem>>, vector<1x1x64xf32>,
    %97 = vector.extract_strided_slice %92 {offsets = [0, 64], sizes = [1, 64], strides = [1, 1]} : vector<1x128xf32> to vector<1x64xf32>
    %c1_41 = arith.constant 1 : index
    %c0_42 = arith.constant 0 : index
    %c0_43 = arith.constant 0 : index
    %98 = vector.load %arg15[%c1_41, %c0_42, %c0_43] : memref<2x1x64xf32, #tpu.memory_space<vmem>>, vector<1x1x64xf32>
    %99 = vector.shape_cast %98 : vector<1x1x64xf32> to vector<1x64xf32>
    %100 = vector.shape_cast %97 : vector<1x64xf32> to vector<1x1x64xf32>
    tpu.vector_store %arg15[%c1_41, %c0_42, %c0_43], %100 {strides = array<i32>} : memref<2x1x64xf32, #tpu.memory_space<vmem>>, vector<1x1x64xf32>,
    %101 = vector.extract_strided_slice %91 {offsets = [0, 0], sizes = [8, 64], strides = [1, 1]} : vector<8x128xf32> to vector<8x64xf32>
    %102 = vector.extract_strided_slice %91 {offsets = [0, 64], sizes = [8, 64], strides = [1, 1]} : vector<8x128xf32> to vector<8x64xf32>
    %103 = tpu.concatenate %101, %102 in 0 : vector<8x64xf32>, vector<8x64xf32> -> vector<16x64xf32>
    %104 = arith.truncf %103 : vector<16x64xf32> to vector<16x64xbf16>
    %c0_44 = arith.constant 0 : index
    %c0_45 = arith.constant 0 : index
    %105 = vector.load %arg7[%c0_44, %c0_45] : memref<64x32xbf16, #tpu.memory_space<vmem>>, vector<64x32xbf16>
    %cst_46 = arith.constant dense<0.000000e+00> : vector<16x32xf32>
    %106 = tpu.matmul %104, %105, %cst_46 {dimension_numbers = #tpu.dot_dimension_numbers<[1], [0], [0], [1], [0, 0, 1, 1], [], []>} : vector<16x64xbf16>, vector<64x32xbf16>, vector<16x32xf32> -> vector<16x32xf32>
    %c0_47 = arith.constant 0 : index
    %c0_48 = arith.constant 0 : index
    %107 = vector.load %arg8[%c0_47, %c0_48] : memref<1x32xf32, #tpu.memory_space<vmem>>, vector<1x32xf32>
    %108 = vector.broadcast %107 : vector<1x32xf32> to vector<16x32xf32>
    %109 = arith.addf %106, %108 : vector<16x32xf32>
    %110 = arith.addf %109, %4 : vector<16x32xf32>
    %111 = arith.mulf %110, %110 : vector<16x32xf32>
    %cst_49 = arith.constant dense<0.000000e+00> : vector<16xf32>
    %112 = vector.multi_reduction <add>, %111, %cst_49 [1] : vector<16x32xf32> to vector<16xf32>
    %113 = vector.shape_cast %112 : vector<16xf32> to vector<16x1xf32>
    %cst_50 = arith.constant 3.200000e+01 : f32
    %114 = vector.broadcast %cst_50 : f32 to vector<16x1xf32>
    %115 = arith.divf %113, %114 : vector<16x1xf32>
    %cst_51 = arith.constant 9.99999997E-7 : f32
    %116 = vector.broadcast %cst_51 : f32 to vector<16x1xf32>
    %117 = arith.addf %115, %116 : vector<16x1xf32>
    %118 = math.rsqrt %117 : vector<16x1xf32>
    %119 = vector.broadcast %118 : vector<16x1xf32> to vector<16x32xf32>
    %120 = arith.mulf %110, %119 : vector<16x32xf32>
    %c0_52 = arith.constant 0 : index
    %c0_53 = arith.constant 0 : index
    %121 = vector.load %arg4[%c0_52, %c0_53] : memref<1x32xf32, #tpu.memory_space<vmem>>, vector<1x32xf32>
    %122 = vector.broadcast %121 : vector<1x32xf32> to vector<16x32xf32>
    %123 = arith.mulf %120, %122 : vector<16x32xf32>
    %124 = arith.truncf %123 : vector<16x32xf32> to vector<16x32xbf16>
    %c0_54 = arith.constant 0 : index
    %c0_55 = arith.constant 0 : index
    %125 = vector.load %arg9[%c0_54, %c0_55] : memref<32x128xbf16, #tpu.memory_space<vmem>>, vector<32x128xbf16>
    %cst_56 = arith.constant dense<0.000000e+00> : vector<16x128xf32>
    %126 = tpu.matmul %124, %125, %cst_56 {dimension_numbers = #tpu.dot_dimension_numbers<[1], [0], [0], [1], [0, 0, 1, 1], [], []>} : vector<16x32xbf16>, vector<32x128xbf16>, vector<16x128xf32> -> vector<16x128xf32>
    %c0_57 = arith.constant 0 : index
    %c0_58 = arith.constant 0 : index
    %127 = vector.load %arg10[%c0_57, %c0_58] : memref<1x128xf32, #tpu.memory_space<vmem>>, vector<1x128xf32>
    %128 = vector.broadcast %127 : vector<1x128xf32> to vector<16x128xf32>
    %129 = arith.addf %126, %128 : vector<16x128xf32>
    %130 = vector.extract_strided_slice %129 {offsets = [0, 64], sizes = [16, 64], strides = [1, 1]} : vector<16x128xf32> to vector<16x64xf32>
    %131 = vector.extract_strided_slice %129 {offsets = [0, 0], sizes = [16, 64], strides = [1, 1]} : vector<16x128xf32> to vector<16x64xf32>
    %132 = arith.negf %130 : vector<16x64xf32>
    %133 = math.exp %132 : vector<16x64xf32>
    %cst_59 = arith.constant 1.000000e+00 : f32
    %134 = vector.broadcast %cst_59 : f32 to vector<16x64xf32>
    %135 = arith.addf %134, %133 : vector<16x64xf32>
    %136 = arith.divf %134, %135 : vector<16x64xf32>
    %137 = arith.mulf %130, %136 : vector<16x64xf32>
    %138 = arith.mulf %131, %137 : vector<16x64xf32>
    %139 = arith.truncf %138 : vector<16x64xf32> to vector<16x64xbf16>
    %c0_60 = arith.constant 0 : index
    %c0_61 = arith.constant 0 : index
    %140 = vector.load %arg11[%c0_60, %c0_61] : memref<64x32xbf16, #tpu.memory_space<vmem>>, vector<64x32xbf16>
    %cst_62 = arith.constant dense<0.000000e+00> : vector<16x32xf32>
    %141 = tpu.matmul %139, %140, %cst_62 {dimension_numbers = #tpu.dot_dimension_numbers<[1], [0], [0], [1], [0, 0, 1, 1], [], []>} : vector<16x64xbf16>, vector<64x32xbf16>, vector<16x32xf32> -> vector<16x32xf32>
    %c0_63 = arith.constant 0 : index
    %c0_64 = arith.constant 0 : index
    %142 = vector.load %arg12[%c0_63, %c0_64] : memref<1x32xf32, #tpu.memory_space<vmem>>, vector<1x32xf32>
    %143 = vector.broadcast %142 : vector<1x32xf32> to vector<16x32xf32>
    %144 = arith.addf %141, %143 : vector<16x32xf32>
    %145 = arith.addf %144, %110 : vector<16x32xf32>
    %146 = vector.extract_strided_slice %145 {offsets = [0, 0], sizes = [8, 32], strides = [1, 1]} : vector<16x32xf32> to vector<8x32xf32>
    %c0_65 = arith.constant 0 : index
    %c0_66 = arith.constant 0 : index
    %c0_67 = arith.constant 0 : index
    %147 = vector.load %arg14[%c0_65, %c0_66, %c0_67] : memref<2x8x32xf32, #tpu.memory_space<vmem>>, vector<1x8x32xf32>
    %148 = vector.shape_cast %147 : vector<1x8x32xf32> to vector<8x32xf32>
    %149 = vector.shape_cast %146 : vector<8x32xf32> to vector<1x8x32xf32>
    tpu.vector_store %arg14[%c0_65, %c0_66, %c0_67], %149 {strides = array<i32>} : memref<2x8x32xf32, #tpu.memory_space<vmem>>, vector<1x8x32xf32>,
    %150 = vector.extract_strided_slice %145 {offsets = [8, 0], sizes = [8, 32], strides = [1, 1]} : vector<16x32xf32> to vector<8x32xf32>
    %c1_68 = arith.constant 1 : index
    %c0_69 = arith.constant 0 : index
    %c0_70 = arith.constant 0 : index
    %151 = vector.load %arg14[%c1_68, %c0_69, %c0_70] : memref<2x8x32xf32, #tpu.memory_space<vmem>>, vector<1x8x32xf32>
    %152 = vector.shape_cast %151 : vector<1x8x32xf32> to vector<8x32xf32>
    %153 = vector.shape_cast %150 : vector<8x32xf32> to vector<1x8x32xf32>
    tpu.vector_store %arg14[%c1_68, %c0_69, %c0_70], %153 {strides = array<i32>} : memref<2x8x32xf32, #tpu.memory_space<vmem>>, vector<1x8x32xf32>,
    return
  }
  func.func @transform_0(%arg0: i32) -> (i32, i32, i32) {
    %c0_i32 = arith.constant 0 : i32
    %c0_i32_0 = arith.constant 0 : i32
    %c0_i32_1 = arith.constant 0 : i32
    return %arg0, %c0_i32, %c0_i32_0 : i32, i32, i32
  }
  func.func @transform_1(%arg0: i32) -> (i32, i32, i32) {
    %c0_i32 = arith.constant 0 : i32
    %c0_i32_0 = arith.constant 0 : i32
    %c0_i32_1 = arith.constant 0 : i32
    return %arg0, %c0_i32, %c0_i32_0 : i32, i32, i32
  }
  func.func @transform_2(%arg0: i32) -> (i32, i32) {
    %c0_i32 = arith.constant 0 : i32
    %c0_i32_0 = arith.constant 0 : i32
    %c0_i32_1 = arith.constant 0 : i32
    return %c0_i32, %c0_i32_0 : i32, i32
  }
  func.func @transform_3(%arg0: i32) -> (i32, i32) {
    %c0_i32 = arith.constant 0 : i32
    %c0_i32_0 = arith.constant 0 : i32
    %c0_i32_1 = arith.constant 0 : i32
    return %c0_i32, %c0_i32_0 : i32, i32
  }
  func.func @transform_4(%arg0: i32) -> (i32, i32) {
    %c0_i32 = arith.constant 0 : i32
    %c0_i32_0 = arith.constant 0 : i32
    %c0_i32_1 = arith.constant 0 : i32
    return %c0_i32, %c0_i32_0 : i32, i32
  }
  func.func @transform_5(%arg0: i32) -> (i32, i32) {
    %c0_i32 = arith.constant 0 : i32
    %c0_i32_0 = arith.constant 0 : i32
    %c0_i32_1 = arith.constant 0 : i32
    return %c0_i32, %c0_i32_0 : i32, i32
  }
  func.func @transform_6(%arg0: i32) -> (i32, i32) {
    %c0_i32 = arith.constant 0 : i32
    %c0_i32_0 = arith.constant 0 : i32
    %c0_i32_1 = arith.constant 0 : i32
    return %c0_i32, %c0_i32_0 : i32, i32
  }
  func.func @transform_7(%arg0: i32) -> (i32, i32) {
    %c0_i32 = arith.constant 0 : i32
    %c0_i32_0 = arith.constant 0 : i32
    %c0_i32_1 = arith.constant 0 : i32
    return %c0_i32, %c0_i32_0 : i32, i32
  }
  func.func @transform_8(%arg0: i32) -> (i32, i32) {
    %c0_i32 = arith.constant 0 : i32
    %c0_i32_0 = arith.constant 0 : i32
    %c0_i32_1 = arith.constant 0 : i32
    return %c0_i32, %c0_i32_0 : i32, i32
  }
  func.func @transform_9(%arg0: i32) -> (i32, i32) {
    %c0_i32 = arith.constant 0 : i32
    %c0_i32_0 = arith.constant 0 : i32
    %c0_i32_1 = arith.constant 0 : i32
    return %c0_i32, %c0_i32_0 : i32, i32
  }
  func.func @transform_10(%arg0: i32) -> (i32, i32) {
    %c0_i32 = arith.constant 0 : i32
    %c0_i32_0 = arith.constant 0 : i32
    %c0_i32_1 = arith.constant 0 : i32
    return %c0_i32, %c0_i32_0 : i32, i32
  }
  func.func @transform_11(%arg0: i32) -> (i32, i32) {
    %c0_i32 = arith.constant 0 : i32
    %c0_i32_0 = arith.constant 0 : i32
    %c0_i32_1 = arith.constant 0 : i32
    return %c0_i32, %c0_i32_0 : i32, i32
  }
  func.func @transform_12(%arg0: i32) -> (i32, i32) {
    %c0_i32 = arith.constant 0 : i32
    %c0_i32_0 = arith.constant 0 : i32
    %c0_i32_1 = arith.constant 0 : i32
    return %c0_i32, %c0_i32_0 : i32, i32
  }
  func.func @transform_13(%arg0: i32) -> (i32, i32, i32) {
    %c0_i32 = arith.constant 0 : i32
    %c0_i32_0 = arith.constant 0 : i32
    %c0_i32_1 = arith.constant 0 : i32
    return %arg0, %c0_i32, %c0_i32_0 : i32, i32, i32
  }
  func.func @transform_14(%arg0: i32) -> (i32, i32, i32) {
    %c0_i32 = arith.constant 0 : i32
    %c0_i32_0 = arith.constant 0 : i32
    %c0_i32_1 = arith.constant 0 : i32
    return %arg0, %c0_i32, %c0_i32_0 : i32, i32, i32
  }
}

</mosaic_0001>

<llo_original>
// kernel: tpu_custom_call.1
$region0: #{tpu_custom_call.1}
  #allocation0 [shape = 'u32[]', space=smem, size = 0x4, offset = 0x4, fixed_abs, tag = 'smem constant byte address 0x4 - core index']
  #allocation1 [shape = 'u32[72,128]{1,0:T(1,128)}', space=vmem, size = 0x9000, scoped, tag = 'internal scratch']
  %s0 = inlined_call_operand.vmem [shape: f32[2,8,32], index: 0, kind: input, shape index: {}]
  %s1 = inlined_call_operand.vmem [shape: f32[2,1,64], index: 1, kind: input, shape index: {}]
  %s2 = inlined_call_operand.vmem [shape: f32[1,32], index: 2, kind: input, shape index: {}]
  %s3 = inlined_call_operand.vmem [shape: f32[1,32], index: 3, kind: input, shape index: {}]
  %s4 = inlined_call_operand.vmem [shape: bf16[32,128], index: 4, kind: input, shape index: {}]
  %s5 = inlined_call_operand.vmem [shape: f32[1,128], index: 5, kind: input, shape index: {}]
  %s6 = inlined_call_operand.vmem [shape: bf16[64,32], index: 6, kind: input, shape index: {}]
  %s7 = inlined_call_operand.vmem [shape: f32[1,32], index: 7, kind: input, shape index: {}]
  %s8 = inlined_call_operand.vmem [shape: bf16[32,128], index: 8, kind: input, shape index: {}]
  %s9 = inlined_call_operand.vmem [shape: f32[1,128], index: 9, kind: input, shape index: {}]
  %s10 = inlined_call_operand.vmem [shape: bf16[64,32], index: 10, kind: input, shape index: {}]
  %s11 = inlined_call_operand.vmem [shape: f32[1,32], index: 11, kind: input, shape index: {}]
  %s12 = inlined_call_operand.vmem [shape: f32[1,64], index: 12, kind: input, shape index: {}]
  %s13 = inlined_call_operand.hbm [shape: f32[2,8,32], index: 13, kind: output, shape index: {0}]
  %s14 = inlined_call_operand.hbm [shape: f32[2,1,64], index: 14, kind: output, shape index: {1}]
  %15 = xla_tuple %s13, %s14
  %s16 = sld [smem:[#allocation0]]
  $region70: #{tpu_custom_call.1} parent=0
    _
  %s18 = ssub.s32 1, %s16
  %s19 = scalar_select 0, %s18, %s16
  $region1: #{tpu_custom_call.1} parent=0
    #allocation2 [shape = 'u8[8192]{0}', space=vmem, size = 0x2000, scoped, tag = 'output window, operand 0, single buffered']
    #allocation3 [shape = 's32[1]{0}', space=sflag, size = 0x4, scoped, tag = 'scoped memory for tpu_custom_call.1']
    #allocation4 [shape = 'u8[1024]{0}', space=vmem, size = 0x400, scoped, tag = 'output window, operand 1, single buffered']
    #allocation5 [shape = 's32[1]{0}', space=sflag, size = 0x4, scoped, tag = 'scoped memory for tpu_custom_call.1']
    %20 = vsyncpa [#allocation3], 0
    %21 = vsyncpa [#allocation5], 0
    // Predicated region
    $region2: #{tpu_custom_call.1} parent=1 // pred_check
      _
    $region3: #{tpu_custom_call.1} parent=1 // pred_check_branch
      %23 = sbr.rel (0) target = $region5
    $region4: #{tpu_custom_call.1} parent=1 // pred_region
      _
    $region5: #{tpu_custom_call.1} parent=1 // pred_fallthru
      _
    // Predicated region
    $region6: #{tpu_custom_call.1} parent=1 // pred_check
      _
    $region7: #{tpu_custom_call.1} parent=1 // pred_check_branch
      %25 = sbr.rel (0) target = $region9
    $region8: #{tpu_custom_call.1} parent=1 // pred_region
      _
    $region9: #{tpu_custom_call.1} parent=1 // pred_fallthru
      _
    // Predicated region
    $region10: #{tpu_custom_call.1} parent=1 // pred_check
      _
    $region11: #{tpu_custom_call.1} parent=1 // pred_check_branch
      %27 = sbr.rel (0) target = $region13
    $region12: #{tpu_custom_call.1} parent=1 // pred_region
      _
    $region13: #{tpu_custom_call.1} parent=1 // pred_fallthru
      _
    // Predicated region
    $region14: #{tpu_custom_call.1} parent=1 // pred_check
      _
    $region15: #{tpu_custom_call.1} parent=1 // pred_check_branch
      %29 = sbr.rel (0) target = $region17
    $region16: #{tpu_custom_call.1} parent=1 // pred_region
      _
    $region17: #{tpu_custom_call.1} parent=1 // pred_fallthru
      _
    // Predicated region
    $region18: #{tpu_custom_call.1} parent=1 // pred_check
      _
    $region19: #{tpu_custom_call.1} parent=1 // pred_check_branch
      %31 = sbr.rel (0) target = $region21
    $region20: #{tpu_custom_call.1} parent=1 // pred_region
      _
    $region21: #{tpu_custom_call.1} parent=1 // pred_fallthru
      _
    // Predicated region
    $region22: #{tpu_custom_call.1} parent=1 // pred_check
      _
    $region23: #{tpu_custom_call.1} parent=1 // pred_check_branch
      %33 = sbr.rel (0) target = $region25
    $region24: #{tpu_custom_call.1} parent=1 // pred_region
      _
    $region25: #{tpu_custom_call.1} parent=1 // pred_fallthru
      _
    // Predicated region
    $region26: #{tpu_custom_call.1} parent=1 // pred_check
      _
    $region27: #{tpu_custom_call.1} parent=1 // pred_check_branch
      %35 = sbr.rel (0) target = $region29
    $region28: #{tpu_custom_call.1} parent=1 // pred_region
      _
    $region29: #{tpu_custom_call.1} parent=1 // pred_fallthru
      _
    // Predicated region
    $region30: #{tpu_custom_call.1} parent=1 // pred_check
      _
    $region31: #{tpu_custom_call.1} parent=1 // pred_check_branch
      %37 = sbr.rel (0) target = $region33
    $region32: #{tpu_custom_call.1} parent=1 // pred_region
      _
    $region33: #{tpu_custom_call.1} parent=1 // pred_fallthru
      _
    // Predicated region
    $region34: #{tpu_custom_call.1} parent=1 // pred_check
      _
    $region35: #{tpu_custom_call.1} parent=1 // pred_check_branch
      %39 = sbr.rel (0) target = $region37
    $region36: #{tpu_custom_call.1} parent=1 // pred_region
      _
    $region37: #{tpu_custom_call.1} parent=1 // pred_fallthru
      _
    // Predicated region
    $region38: #{tpu_custom_call.1} parent=1 // pred_check
      _
    $region39: #{tpu_custom_call.1} parent=1 // pred_check_branch
      %41 = sbr.rel (0) target = $region41
    $region40: #{tpu_custom_call.1} parent=1 // pred_region
      _
    $region41: #{tpu_custom_call.1} parent=1 // pred_fallthru
      _
    // Predicated region
    $region42: #{tpu_custom_call.1} parent=1 // pred_check
      _
    $region43: #{tpu_custom_call.1} parent=1 // pred_check_branch
      %43 = sbr.rel (0) target = $region45
    $region44: #{tpu_custom_call.1} parent=1 // pred_region
      _
    $region45: #{tpu_custom_call.1} parent=1 // pred_fallthru
      _
    // Predicated region
    $region46: #{tpu_custom_call.1} parent=1 // pred_check
      _
    $region47: #{tpu_custom_call.1} parent=1 // pred_check_branch
      %45 = sbr.rel (0) target = $region49
    $region48: #{tpu_custom_call.1} parent=1 // pred_region
      _
    $region49: #{tpu_custom_call.1} parent=1 // pred_fallthru
      _
    // Predicated region
    $region50: #{tpu_custom_call.1} parent=1 // pred_check
      _
    $region51: #{tpu_custom_call.1} parent=1 // pred_check_branch
      %47 = sbr.rel (0) target = $region53
    $region52: #{tpu_custom_call.1} parent=1 // pred_region
      _
    $region53: #{tpu_custom_call.1} parent=1 // pred_fallthru
      _
    %v49 = vld [vmem:[%s0] sm:$0xff]
    %s50 = scalar_lea.vmem %s0, 8
    %v51 = vld [vmem:[%s50] sm:$0xff]
    %v52 = vmul.f32 %v49, %v49
    %v53 = vmul.f32 %v51, %v51
    %vm54 = vcmask 261120
    %v55 = vsel %vm54, %v52, 0.0
    %56 = vadd.xlane.f32.xlu0 %v55
    %v57 = vpop.xlane.xlu0 %56
    %v58 = vsel %vm54, %v53, 0.0
    %59 = vadd.xlane.f32.xlu0 %v58
    %v60 = vpop.xlane.xlu0 %59
    %v61 = vrcp.pop 32.0
    %v62 = vmul.f32 32.0, %v61
    %v63 = vsub.f32 1.0, %v62
    %v64 = vmul.f32 %v61, %v63
    %v65 = vadd.f32 %v61, %v64
    %vm66 = vweird.f32 %v61
    %v67 = vsel %vm66, %v61, %v65
    %v68 = vmul.f32 %v57, %v67
    %v69 = vmul.f32 %v60, %v67
    %v70 = vadd.f32 %v68, 1e-06
    %v71 = vadd.f32 %v69, 1e-06
    %v72 = vrsqrt.pop %v70
    %v73 = vmul.f32 %v72, %v70
    %v74 = vmul.f32 %v73, %v72
    %v75 = vmul.f32 0.5, %v74
    %v76 = vsub.f32 1.5, %v75
    %v77 = vmul.f32 %v72, %v76
    %vm78 = vweird.f32 %v70
    %vm79 = vweird.f32 %v72
    %vm80 = vmor %vm78, %vm79
    %v81 = vsel %vm80, %v72, %v77
    %v82 = vrsqrt.pop %v71
    %v83 = vmul.f32 %v82, %v71
    %v84 = vmul.f32 %v83, %v82
    %v85 = vmul.f32 0.5, %v84
    %v86 = vsub.f32 1.5, %v85
    %v87 = vmul.f32 %v82, %v86
    %vm88 = vweird.f32 %v71
    %vm89 = vweird.f32 %v82
    %vm90 = vmor %vm88, %vm89
    %v91 = vsel %vm90, %v82, %v87
    %v92 = vmul.f32 %v49, %v81
    %v93 = vmul.f32 %v51, %v91
    %v94 = vld [vmem:[%s2] sm:$0x1]
    %v96 = vperm.slane %v94, 0
    %v98 = vmul.f32 %v92, %v96
    %v99 = vmul.f32 %v93, %v96
    %v100 = vpack.c.bf16 %v99, %v98
    %v101 = vld [vmem:[%s4] sm:$0xf]
    %v102 = vld [vmem:[%s4 + $0x4] sm:$0xf]
    %v103 = vld [vmem:[%s4 + $0x8] sm:$0xf]
    %v104 = vld [vmem:[%s4 + $0xc] sm:$0xf]
    %v105 = vld [vmem:[%s5] sm:$0x1]
    %v107 = vperm.slane %v105, 0
    %v113 = vunpack.c.l.b16 %v101
    %v114 = vunpack.c.l.b16 %v102
    %v115 = vunpack.c.l.b16 %v103
    %v116 = vunpack.c.l.b16 %v104
    %v117 = vpack.c.b16 %v114, %v113
    %v118 = vpack.c.b16 %v116, %v115
    %v122 = vsel %vm54, %v100, 0
    %124 = vmatpush.bf16.msra.mxu0 0
    %125 = vmatpush.bf16.msra.mxu0 0
    %126 = vmatpush.bf16.msra.mxu0 0
    %127 = vmatpush.bf16.msra.mxu0 0
    %128 = vmatpush.bf16.msra.mxu0 0
    %129 = vmatpush.bf16.msra.mxu0 0
    %130 = vmatpush.bf16.msra.mxu0 %v118
    %131 = vmatpush.bf16.msra.mxu0 %v117
    %132 = vmatmul.bf16.gmra.mxu0 %v122
    %v133 = vpop.f32.mrf.mxu0
    %v134 = vadd.f32 %v107, %v133
    %v135 = vpop.f32.mrf.mxu0
    %v136 = vadd.f32 %v107, %v135
    %137 = vdwg.mxu0
    %v138 = vxor.u32 %v134, 2147483648
    %v139 = vxor.u32 %v136, 2147483648
    %v140 = vmul.f32 %v138, 1.442695
    %v141 = vpow.pop %v140
    %v142 = vmul.f32 %v139, 1.442695
    %v143 = vpow.pop %v142
    %v144 = vadd.f32 %v141, 1.0
    %v145 = vadd.f32 %v143, 1.0
    %v146 = vrcp.pop %v144
    %v147 = vmul.f32 %v144, %v146
    %v148 = vsub.f32 1.0, %v147
    %v149 = vmul.f32 %v146, %v148
    %v150 = vadd.f32 %v146, %v149
    %vm151 = vweird.f32 %v144
    %vm152 = vweird.f32 %v146
    %vm153 = vmor %vm151, %vm152
    %v154 = vsel %vm153, %v146, %v150
    %v155 = vand.u32 2147483647, %v144
    %vm156 = vcmp.eq.f32.partialorder %v155, 8.507059e+37
    %v157 = vand.u32 %v144, 2147483648
    %v158 = vor.u32 1.1754944e-38, %v157
    %v159 = vsel %vm156, %v158, %v154
    %v160 = vmul.f32 1.0, %v159
    %v161 = vrcp.pop %v145
    %v162 = vmul.f32 %v145, %v161
    %v163 = vsub.f32 1.0, %v162
    %v164 = vmul.f32 %v161, %v163
    %v165 = vadd.f32 %v161, %v164
    %vm166 = vweird.f32 %v145
    %vm167 = vweird.f32 %v161
    %vm168 = vmor %vm166, %vm167
    %v169 = vsel %vm168, %v161, %v165
    %v170 = vand.u32 2147483647, %v145
    %vm171 = vcmp.eq.f32.partialorder %v170, 8.507059e+37
    %v172 = vand.u32 %v145, 2147483648
    %v173 = vor.u32 1.1754944e-38, %v172
    %v174 = vsel %vm171, %v173, %v169
    %v175 = vmul.f32 1.0, %v174
    %v176 = vld [vmem:[%s12] sm:$0x1]
    %v178 = vperm.slane %v176, 0
    %v180 = vmul.f32 %v160, %v178
    %v181 = vmul.f32 %v175, %v178
    %v182 = vsub.f32 1.0, %v180
    %v183 = vsub.f32 1.0, %v181
    %v184 = vtanh.pop %v134
    %v185 = vtanh.pop %v136
    %188 = vrot.lane.b32.xlu0 %v180, 64
    %v189 = vpop.permute.xlu0 %188
    %190 = vrot.lane.b32.xlu0 %v181, 64
    %v191 = vpop.permute.xlu0 %190
    %v194 = vmul.f32 %v184, %v189
    %v195 = vmul.f32 %v185, %v191
    %197 = vrot.lane.b32.xlu0 %v183, 64
    %v198 = vpop.permute.xlu0 %197
    %vm200 = vcmask 523264
    %v201 = vsel %vm200, %v182, %v198
    %203 = vrot.lane.b32.xlu0 %v194, 64
    %v204 = vpop.permute.xlu0 %203
    %v206 = vsel %vm200, %v204, %v195
    %v207 = vld [vmem:[%s1] sm:$0x1]
    %s208 = scalar_lea.vmem %s1, 1
    %v209 = vld [vmem:[%s208] sm:$0x1]
    %v211 = vperm.slane %v209, 0
    %212 = vrot.lane.b32.xlu0 %v211, 64
    %v213 = vpop.permute.xlu0 %212
    %v215 = vsel %vm200, %v207, %v213
    %v216 = vlaneseq
    %v217 = vshrl.u32 %v216, 7
    %vm218 = vcmp.lt.s32.totalorder %v217, 1
    %v219 = vrot.slane %v201, 7
    %v220 = vsel %vm218, 1.0, %v219
    %v221 = vrot.slane %v206, 7
    %v222 = vsel %vm218, 0.0, %v221
    %v223 = vmul.f32 %v201, %v222
    %v224 = vadd.f32 %v223, %v206
    %v225 = vmul.f32 %v201, %v220
    %vm226 = vcmp.lt.s32.totalorder %v217, 2
    %v227 = vrot.slane %v225, 6
    %v228 = vsel %vm226, 1.0, %v227
    %v229 = vrot.slane %v224, 6
    %v230 = vsel %vm226, 0.0, %v229
    %v231 = vmul.f32 %v225, %v230
    %v232 = vadd.f32 %v231, %v224
    %v233 = vmul.f32 %v225, %v228
    %vm234 = vcmp.lt.s32.totalorder %v217, 4
    %v235 = vrot.slane %v233, 4
    %v236 = vsel %vm234, 1.0, %v235
    %v237 = vrot.slane %v232, 4
    %v238 = vsel %vm234, 0.0, %v237
    %v239 = vmul.f32 %v233, %v238
    %v240 = vadd.f32 %v239, %v232
    %v241 = vmul.f32 %v233, %v236
    %v242 = vperm.slane %v215, 0
    %v243 = vmul.f32 %v241, %v242
    %v244 = vadd.f32 %v243, %v240
    %vm245 = vcmask 523271
    %246 = vst.msk [vmem:[#allocation4 - $0x7] sm:$0x80] %vm245, %v244
    %248 = vrot.lane.b32.xlu0 %v244, 64
    %v249 = vpop.permute.xlu0 %248
    %s251 = scalar_lea.vmem [#allocation4], 1
    %252 = vst.msk [vmem:[%s251 - $0x7] sm:$0x80] %vm245, %v249
    %v253 = vpack.c.bf16 %v249, %v244
    %v254 = vld [vmem:[%s6] sm:$0xf]
    %v255 = vld [vmem:[%s6 + $0x4] sm:$0xf]
    %v256 = vld [vmem:[%s6 + $0x8] sm:$0xf]
    %v257 = vld [vmem:[%s6 + $0xc] sm:$0xf]
    %v258 = vld [vmem:[%s6 + $0x10] sm:$0xf]
    %v259 = vld [vmem:[%s6 + $0x14] sm:$0xf]
    %v260 = vld [vmem:[%s6 + $0x18] sm:$0xf]
    %v261 = vld [vmem:[%s6 + $0x1c] sm:$0xf]
    %v262 = vld [vmem:[%s7] sm:$0x1]
    %v264 = vperm.slane %v262, 0
    %v274 = vunpack.c.l.b16 %v254
    %v275 = vunpack.c.l.b16 %v255
    %v276 = vunpack.c.l.b16 %v256
    %v277 = vunpack.c.l.b16 %v257
    %v278 = vunpack.c.l.b16 %v258
    %v279 = vunpack.c.l.b16 %v259
    %v280 = vunpack.c.l.b16 %v260
    %v281 = vunpack.c.l.b16 %v261
    %v282 = vpack.c.b16 %v275, %v274
    %v283 = vpack.c.b16 %v277, %v276
    %v284 = vpack.c.b16 %v279, %v278
    %v285 = vpack.c.b16 %v281, %v280
    %v291 = vsel %vm200, %v253, 0
    %293 = vmatpush.bf16.msra.mxu0 0
    %294 = vmatpush.bf16.msra.mxu0 0
    %295 = vmatpush.bf16.msra.mxu0 0
    %296 = vmatpush.bf16.msra.mxu0 0
    %297 = vmatpush.bf16.msra.mxu0 %v285
    %298 = vmatpush.bf16.msra.mxu0 %v284
    %299 = vmatpush.bf16.msra.mxu0 %v283
    %300 = vmatpush.bf16.msra.mxu0 %v282
    %301 = vmatmul.bf16.gmra.mxu0 %v291
    %v302 = vpop.f32.mrf.mxu0
    %v303 = vadd.f32 %v264, %v302
    %v304 = vpop.f32.mrf.mxu0
    %v305 = vadd.f32 %v264, %v304
    %306 = vdwg.mxu0
    %v307 = vadd.f32 %v303, %v49
    %v308 = vadd.f32 %v305, %v51
    %v309 = vmul.f32 %v307, %v307
    %v310 = vmul.f32 %v308, %v308
    %v311 = vsel %vm54, %v309, 0.0
    %312 = vadd.xlane.f32.xlu0 %v311
    %v313 = vpop.xlane.xlu0 %312
    %v314 = vsel %vm54, %v310, 0.0
    %315 = vadd.xlane.f32.xlu0 %v314
    %v316 = vpop.xlane.xlu0 %315
    %v317 = vmul.f32 %v313, %v67
    %v318 = vmul.f32 %v316, %v67
    %v319 = vadd.f32 %v317, 1e-06
    %v320 = vadd.f32 %v318, 1e-06
    %v321 = vrsqrt.pop %v319
    %v322 = vmul.f32 %v321, %v319
    %v323 = vmul.f32 %v322, %v321
    %v324 = vmul.f32 0.5, %v323
    %v325 = vsub.f32 1.5, %v324
    %v326 = vmul.f32 %v321, %v325
    %vm327 = vweird.f32 %v319
    %vm328 = vweird.f32 %v321
    %vm329 = vmor %vm327, %vm328
    %v330 = vsel %vm329, %v321, %v326
    %v331 = vrsqrt.pop %v320
    %v332 = vmul.f32 %v331, %v320
    %v333 = vmul.f32 %v332, %v331
    %v334 = vmul.f32 0.5, %v333
    %v335 = vsub.f32 1.5, %v334
    %v336 = vmul.f32 %v331, %v335
    %vm337 = vweird.f32 %v320
    %vm338 = vweird.f32 %v331
    %vm339 = vmor %vm337, %vm338
    %v340 = vsel %vm339, %v331, %v336
    %v341 = vmul.f32 %v307, %v330
    %v342 = vmul.f32 %v308, %v340
    %v343 = vld [vmem:[%s3] sm:$0x1]
    %v345 = vperm.slane %v343, 0
    %v347 = vmul.f32 %v341, %v345
    %v348 = vmul.f32 %v342, %v345
    %v349 = vpack.c.bf16 %v348, %v347
    %v350 = vld [vmem:[%s8] sm:$0xf]
    %v351 = vld [vmem:[%s8 + $0x4] sm:$0xf]
    %v352 = vld [vmem:[%s8 + $0x8] sm:$0xf]
    %v353 = vld [vmem:[%s8 + $0xc] sm:$0xf]
    %v354 = vld [vmem:[%s9] sm:$0x1]
    %v356 = vperm.slane %v354, 0
    %v362 = vunpack.c.l.b16 %v350
    %v363 = vunpack.c.l.b16 %v351
    %v364 = vunpack.c.l.b16 %v352
    %v365 = vunpack.c.l.b16 %v353
    %v366 = vpack.c.b16 %v363, %v362
    %v367 = vpack.c.b16 %v365, %v364
    %v371 = vsel %vm54, %v349, 0
    %373 = vmatpush.bf16.msra.mxu0 0
    %374 = vmatpush.bf16.msra.mxu0 0
    %375 = vmatpush.bf16.msra.mxu0 0
    %376 = vmatpush.bf16.msra.mxu0 0
    %377 = vmatpush.bf16.msra.mxu0 0
    %378 = vmatpush.bf16.msra.mxu0 0
    %379 = vmatpush.bf16.msra.mxu0 %v367
    %380 = vmatpush.bf16.msra.mxu0 %v366
    %381 = vmatmul.bf16.gmra.mxu0 %v371
    %v382 = vpop.f32.mrf.mxu0
    %v383 = vadd.f32 %v356, %v382
    %v384 = vpop.f32.mrf.mxu0
    %v385 = vadd.f32 %v356, %v384
    %386 = vdwg.mxu0
    %v387 = vxor.u32 %v383, 2147483648
    %v388 = vxor.u32 %v385, 2147483648
    %v389 = vmul.f32 %v387, 1.442695
    %v390 = vpow.pop %v389
    %v391 = vmul.f32 %v388, 1.442695
    %v392 = vpow.pop %v391
    %v393 = vadd.f32 %v390, 1.0
    %v394 = vadd.f32 %v392, 1.0
    %v395 = vrcp.pop %v393
    %v396 = vmul.f32 %v393, %v395
    %v397 = vsub.f32 1.0, %v396
    %v398 = vmul.f32 %v395, %v397
    %v399 = vadd.f32 %v395, %v398
    %vm400 = vweird.f32 %v393
    %vm401 = vweird.f32 %v395
    %vm402 = vmor %vm400, %vm401
    %v403 = vsel %vm402, %v395, %v399
    %v404 = vand.u32 2147483647, %v393
    %vm405 = vcmp.eq.f32.partialorder %v404, 8.507059e+37
    %v406 = vand.u32 %v393, 2147483648
    %v407 = vor.u32 1.1754944e-38, %v406
    %v408 = vsel %vm405, %v407, %v403
    %v409 = vmul.f32 1.0, %v408
    %v410 = vrcp.pop %v394
    %v411 = vmul.f32 %v394, %v410
    %v412 = vsub.f32 1.0, %v411
    %v413 = vmul.f32 %v410, %v412
    %v414 = vadd.f32 %v410, %v413
    %vm415 = vweird.f32 %v394
    %vm416 = vweird.f32 %v410
    %vm417 = vmor %vm415, %vm416
    %v418 = vsel %vm417, %v410, %v414
    %v419 = vand.u32 2147483647, %v394
    %vm420 = vcmp.eq.f32.partialorder %v419, 8.507059e+37
    %v421 = vand.u32 %v394, 2147483648
    %v422 = vor.u32 1.1754944e-38, %v421
    %v423 = vsel %vm420, %v422, %v418
    %v424 = vmul.f32 1.0, %v423
    %v425 = vmul.f32 %v383, %v409
    %v426 = vmul.f32 %v385, %v424
    %429 = vrot.lane.b32.xlu0 %v425, 64
    %v430 = vpop.permute.xlu0 %429
    %431 = vrot.lane.b32.xlu0 %v426, 64
    %v432 = vpop.permute.xlu0 %431
    %v435 = vmul.f32 %v383, %v430
    %v436 = vmul.f32 %v385, %v432
    %v437 = vpack.c.bf16 %v436, %v435
    %v438 = vld [vmem:[%s10] sm:$0xf]
    %v439 = vld [vmem:[%s10 + $0x4] sm:$0xf]
    %v440 = vld [vmem:[%s10 + $0x8] sm:$0xf]
    %v441 = vld [vmem:[%s10 + $0xc] sm:$0xf]
    %v442 = vld [vmem:[%s10 + $0x10] sm:$0xf]
    %v443 = vld [vmem:[%s10 + $0x14] sm:$0xf]
    %v444 = vld [vmem:[%s10 + $0x18] sm:$0xf]
    %v445 = vld [vmem:[%s10 + $0x1c] sm:$0xf]
    %v446 = vld [vmem:[%s11] sm:$0x1]
    %v448 = vperm.slane %v446, 0
    %v458 = vunpack.c.l.b16 %v438
    %v459 = vunpack.c.l.b16 %v439
    %v460 = vunpack.c.l.b16 %v440
    %v461 = vunpack.c.l.b16 %v441
    %v462 = vunpack.c.l.b16 %v442
    %v463 = vunpack.c.l.b16 %v443
    %v464 = vunpack.c.l.b16 %v444
    %v465 = vunpack.c.l.b16 %v445
    %v466 = vpack.c.b16 %v459, %v458
    %v467 = vpack.c.b16 %v461, %v460
    %v468 = vpack.c.b16 %v463, %v462
    %v469 = vpack.c.b16 %v465, %v464
    %v475 = vsel %vm200, %v437, 0
    %477 = vmatpush.bf16.msra.mxu0 0
    %478 = vmatpush.bf16.msra.mxu0 0
    %479 = vmatpush.bf16.msra.mxu0 0
    %480 = vmatpush.bf16.msra.mxu0 0
    %481 = vmatpush.bf16.msra.mxu0 %v469
    %482 = vmatpush.bf16.msra.mxu0 %v468
    %483 = vmatpush.bf16.msra.mxu0 %v467
    %484 = vmatpush.bf16.msra.mxu0 %v466
    %485 = vmatmul.bf16.gmra.mxu0 %v475
    %v486 = vpop.f32.mrf.mxu0
    %v487 = vadd.f32 %v448, %v486
    %v488 = vpop.f32.mrf.mxu0
    %v489 = vadd.f32 %v448, %v488
    %490 = vdwg.mxu0
    %v491 = vadd.f32 %v487, %v307
    %v492 = vadd.f32 %v489, %v308
    %493 = vst.msk [vmem:[#allocation2] sm:$0xff] %vm54, %v491
    %s494 = scalar_lea.vmem [#allocation2], 8
    %495 = vst.msk [vmem:[%s494] sm:$0xff] %vm54, %v492
    // Predicated region
    $region54: #{tpu_custom_call.1} parent=1 // pred_check
      _
    $region55: #{tpu_custom_call.1} parent=1 // pred_check_branch
      %497 = sbr.rel (0) target = $region57
    $region56: #{tpu_custom_call.1} parent=1 // pred_region
      %499 = vsyncadd [#allocation3], 0
      %s500 = sshll.u32 [#allocation2], 4
      %s501 = int_to_ptr.vmem [resolvable:$true] %s500
      %s502 = sshll.u32 %s13, 4
      %s503 = int_to_ptr.hbm [resolvable:$true] %s502
      %508 = dma.vmem_to_hbm [thread:$0]  %s501, 256, %s503, [#allocation3], 128, 128, 8
    $region57: #{tpu_custom_call.1} parent=1 // pred_fallthru
      _
    // Predicated region
    $region58: #{tpu_custom_call.1} parent=1 // pred_check
      _
    $region59: #{tpu_custom_call.1} parent=1 // pred_check_branch
      %510 = sbr.rel (0) target = $region61
    $region60: #{tpu_custom_call.1} parent=1 // pred_region
      %512 = vsyncadd [#allocation5], 0
      %s513 = sshll.u32 [#allocation4], 4
      %s514 = int_to_ptr.vmem [resolvable:$true] %s513
      %s515 = sshll.u32 %s14, 4
      %s516 = int_to_ptr.hbm [resolvable:$true] %s515
      %521 = dma.vmem_to_hbm [thread:$0]  %s514, 32, %s516, [#allocation5], 16, 16, 1
    $region61: #{tpu_custom_call.1} parent=1 // pred_fallthru
      _
    // Predicated region
    $region62: #{tpu_custom_call.1} parent=1 // pred_check
      _
    $region63: #{tpu_custom_call.1} parent=1 // pred_check_branch
      %523 = sbr.rel (0) target = $region65
    $region64: #{tpu_custom_call.1} parent=1 // pred_region
      %525 = dma.done [#allocation3], 256
    $region65: #{tpu_custom_call.1} parent=1 // pred_fallthru
      _
    // Predicated region
    $region66: #{tpu_custom_call.1} parent=1 // pred_check
      _
    $region67: #{tpu_custom_call.1} parent=1 // pred_check_branch
      %527 = sbr.rel (0) target = $region69
    $region68: #{tpu_custom_call.1} parent=1 // pred_region
      %529 = dma.done [#allocation5], 32
    $region69: #{tpu_custom_call.1} parent=1 // pred_fallthru
      _
    %530 = vsyncpa [#allocation3], 1
    %531 = vsyncpa [#allocation5], 1

</llo_original>
